<compile_context>
chip_gen: v6e
topology: v6e:2x2x1
jax: 0.10.0
libtpu: 0.0.40
codegen_flags: <defaults>
</compile_context>

<pallas_src>
import functools
import math

import jax
import jax.numpy as jnp
from jax.experimental import pallas as pl
from jax.experimental.pallas import tpu as pltpu

OMEGA = 10.0
EPSILON = 2.0
INV_EPSILON = 1.0 / EPSILON
C = OMEGA * (1.0 - math.log(1.0 + OMEGA / EPSILON))

_LANES = 128
_SUBLANES = 8


def _wing_loss_kernel(pred_ref, true_ref, o_ref, acc_ref, *, inv_batch):
    """Grid axis 0 walks (tile_rows, 128) slabs of the lane-dense inputs.

    acc_ref is an (8, 128) f32 partial-sum accumulator that persists across
    the whole grid (output/scratch resident; axis marked "arbitrary").
    """
    i = pl.program_id(0)

    @pl.when(i == 0)
    def _init():
        acc_ref[...] = jnp.zeros_like(acc_ref)

    # Native-dtype tile in, f32 math inside the kernel (free VPU cast).
    p = pred_ref[...].astype(jnp.float32)
    t = true_ref[...].astype(jnp.float32)
    diff = jnp.abs(p - t)
    linear = OMEGA * jnp.log1p(diff * INV_EPSILON)      # EUP log1p, VPU mul
    nonlinear = diff - C
    losses = jnp.where(diff < OMEGA, linear, nonlinear)

    # Partial-reduce across sublane groups with pure VPU (vreg-wise) adds;
    # keep the expensive cross-lane reduction out of the steady state.
    tr = pred_ref.shape[0]
    acc_ref[...] += jnp.sum(
        losses.reshape(tr // _SUBLANES, _SUBLANES, _LANES), axis=0)

    @pl.when(i == pl.num_programs(0) - 1)
    def _finish():
        # Single XLU reduce + mean over batch (sum / B), once per call.
        o_ref[0, 0] = jnp.sum(acc_ref[...]) * inv_batch


@jax.jit
def _wing_loss_ref(y_pred, y_true):
    """Pure-JAX reference mirroring the PyTorch forward.

    Also serves as the small-input fast path (XLA fuses this better than a
    standalone pallas_call for <~1K-element landmark tensors)."""
    y_pred = y_pred.astype(jnp.float32)
    y_true = y_true.astype(jnp.float32)
    diff = jnp.abs(y_pred - y_true)
    linear = OMEGA * jnp.log(1.0 + diff / EPSILON)
    nonlinear = diff - C
    losses = jnp.where(diff < OMEGA, linear, nonlinear)
    return jnp.mean(jnp.sum(losses, axis=(1, 2)), axis=0)


def wing_loss(y_pred, y_true, *, use_pallas=None, tile_rows=512):
    """WingLoss forward. Accepts [B, K, D] or [B, K*D] inputs, any float dtype.

    tile_rows=512 gives ~256 KiB per f32 input block (double-buffered x2
    inputs ~ 1 MiB VMEM), well under the scoped-VMEM default on v5e/v6e/v7x.
    """
    if y_pred.ndim == 2:
        b0 = y_pred.shape[0]
        y_pred = y_pred.reshape(b0, -1, 2)
        y_true = y_true.reshape(b0, -1, 2)
    b, k, d = y_pred.shape
    n = b * k * d

    if use_pallas is None:
        # Tiny landmark tensors: fixed kernel launch/DMA overhead dominates.
        use_pallas = n >= _SUBLANES * _LANES * 8
    if not use_pallas:
        return _wing_loss_ref(y_pred, y_true)

    # Lane-dense packing: flatten, zero-pad (padding contributes exactly 0 to
    # the loss sum since diff==0 there) and reshape to (rows, 128) with rows a
    # multiple of the tile size (itself a multiple of 8 sublanes).
    rows = -(-n // _LANES)
    rows = -(-rows // _SUBLANES) * _SUBLANES
    tr = max(_SUBLANES, (min(tile_rows, rows) // _SUBLANES) * _SUBLANES)
    rows = -(-rows // tr) * tr
    padded_n = rows * _LANES

    p_flat = y_pred.reshape(-1)
    t_flat = y_true.reshape(-1)
    if padded_n > n:
        p_flat = jnp.pad(p_flat, (0, padded_n - n))
        t_flat = jnp.pad(t_flat, (0, padded_n - n))
    p2 = p_flat.reshape(rows, _LANES)
    t2 = t_flat.reshape(rows, _LANES)

    kernel = functools.partial(_wing_loss_kernel, inv_batch=1.0 / float(b))
    out = pl.pallas_call(
        kernel,
        out_shape=jax.ShapeDtypeStruct((1, 1), jnp.float32),
        grid_spec=pltpu.PrefetchScalarGridSpec(
            num_scalar_prefetch=0,
            grid=(rows // tr,),
            in_specs=[
                pl.BlockSpec((tr, _LANES), lambda i: (i, 0)),
                pl.BlockSpec((tr, _LANES), lambda i: (i, 0)),
            ],
            out_specs=pl.BlockSpec((1, 1), lambda i: (0, 0),
                                   memory_space=pltpu.MemorySpace.SMEM),
            scratch_shapes=[pltpu.VMEM((_SUBLANES, _LANES), jnp.float32)],
        ),
        compiler_params=pltpu.CompilerParams(
            dimension_semantics=("arbitrary",)),
    )(p2, t2)
    return out[0, 0]


if __name__ == "__main__":
    key = jax.random.PRNGKey(0)
    kp, kt = jax.random.split(key)

    # Small landmark-shaped inputs (B, K, D) consistent with the module.
    B, K, D = 2, 8, 2
    # Scale so both branches of the piecewise wing loss are exercised.
    y_pred = jax.random.normal(kp, (B, K, D), dtype=jnp.float32) * 8.0
    y_true = jax.random.normal(kt, (B, K, D), dtype=jnp.float32) * 8.0

    # 1) Force the Pallas kernel on the small input (single grid step).
    loss = wing_loss(y_pred, y_true, use_pallas=True)
    jax.block_until_ready(loss)
    ref = _wing_loss_ref(y_pred, y_true)
    assert jnp.allclose(loss, ref, rtol=1e-5, atol=1e-5), (loss, ref)

    # 2) Auto-dispatch: tiny input falls back to the fused XLA reference.
    loss_auto = wing_loss(y_pred, y_true)
    assert jnp.allclose(loss_auto, ref, rtol=1e-5, atol=1e-5), (loss_auto, ref)

    # 3) Slightly larger bf16 input with a small tile so the multi-step
    #    pipelined accumulator path (grid > 1) and native-dtype input path
    #    are exercised.
    B2, K2, D2 = 16, 64, 2
    kp2, kt2 = jax.random.split(jax.random.PRNGKey(1))
    yp_bf16 = (jax.random.normal(kp2, (B2, K2, D2), dtype=jnp.float32) * 8.0
               ).astype(jnp.bfloat16)
    yt_bf16 = (jax.random.normal(kt2, (B2, K2, D2), dtype=jnp.float32) * 8.0
               ).astype(jnp.bfloat16)
    loss2 = wing_loss(yp_bf16, yt_bf16, use_pallas=True, tile_rows=8)
    jax.block_until_ready(loss2)
    ref2 = _wing_loss_ref(yp_bf16, yt_bf16)
    assert jnp.allclose(loss2, ref2, rtol=1e-4, atol=1e-4), (loss2, ref2)

    print("KERNEL_OK")
</pallas_src>

<mosaic_0001>
module attributes {stable_mosaic.version = 11 : i64} {
  func.func @_wing_loss_kernel(%arg0: i32, %arg1: memref<8x128xf32, #tpu.memory_space<vmem>>, %arg2: memref<8x128xf32, #tpu.memory_space<vmem>>, %arg3: memref<1x1xf32, #tpu.memory_space<smem>>, %arg4: memref<8x128xf32, #tpu.memory_space<vmem>>) attributes {dimension_semantics = [#tpu.dimension_semantics<arbitrary>], iteration_bounds = array<i64: 1>, scalar_prefetch = 0 : i64, scratch_operands = 1 : i64, tpu.core_type = #tpu.core_type<tc>, window_params = [{transform_indices = @transform_0, window_bounds = array<i64: 8, 128>}, {transform_indices = @transform_1, window_bounds = array<i64: 8, 128>}, {transform_indices = @transform_2, window_bounds = array<i64: 1, 1>}]} {
    %c0_i32 = arith.constant 0 : i32
    %0 = arith.cmpi eq, %arg0, %c0_i32 : i32
    %1 = arith.extui %0 : i1 to i32
    %c0_i32_0 = arith.constant 0 : i32
    %2 = arith.cmpi ne, %1, %c0_i32_0 : i32
    scf.if %2 {
      %cst_14 = arith.constant 0.000000e+00 : f32
      %25 = vector.broadcast %cst_14 : f32 to vector<8x128xf32>
      %c0_15 = arith.constant 0 : index
      %c0_16 = arith.constant 0 : index
      %26 = vector.load %arg4[%c0_15, %c0_16] : memref<8x128xf32, #tpu.memory_space<vmem>>, vector<8x128xf32>
      tpu.vector_store %arg4[%c0_15, %c0_16], %25 {strides = array<i32>} : memref<8x128xf32, #tpu.memory_space<vmem>>, vector<8x128xf32>,
    } else {
    }
    %c0 = arith.constant 0 : index
    %c0_1 = arith.constant 0 : index
    %3 = vector.load %arg1[%c0, %c0_1] : memref<8x128xf32, #tpu.memory_space<vmem>>, vector<8x128xf32>
    %c0_2 = arith.constant 0 : index
    %c0_3 = arith.constant 0 : index
    %4 = vector.load %arg2[%c0_2, %c0_3] : memref<8x128xf32, #tpu.memory_space<vmem>>, vector<8x128xf32>
    %5 = arith.subf %3, %4 : vector<8x128xf32>
    %6 = math.absf %5 : vector<8x128xf32>
    %cst = arith.constant 5.000000e-01 : f32
    %7 = vector.broadcast %cst : f32 to vector<8x128xf32>
    %8 = arith.mulf %6, %7 : vector<8x128xf32>
    %9 = math.log1p %8 : vector<8x128xf32>
    %cst_4 = arith.constant 1.000000e+01 : f32
    %10 = vector.broadcast %cst_4 : f32 to vector<8x128xf32>
    %11 = arith.mulf %10, %9 : vector<8x128xf32>
    %cst_5 = arith.constant -7.9175949 : f32
    %12 = vector.broadcast %cst_5 : f32 to vector<8x128xf32>
    %13 = arith.subf %6, %12 : vector<8x128xf32>
    %cst_6 = arith.constant 1.000000e+01 : f32
    %14 = vector.broadcast %cst_6 : f32 to vector<8x128xf32>
    %15 = arith.cmpf olt, %6, %14 : vector<8x128xf32>
    %16 = arith.select %15, %11, %13 : vector<8x128xi1>, vector<8x128xf32>
    %c0_7 = arith.constant 0 : index
    %c0_8 = arith.constant 0 : index
    %17 = vector.load %arg4[%c0_7, %c0_8] : memref<8x128xf32, #tpu.memory_space<vmem>>, vector<8x128xf32>
    %18 = vector.shape_cast %16 : vector<8x128xf32> to vector<1x8x128xf32>
    %cst_9 = arith.constant dense<0.000000e+00> : vector<8x128xf32>
    %19 = vector.multi_reduction <add>, %18, %cst_9 [0] : vector<1x8x128xf32> to vector<8x128xf32>
    %20 = arith.addf %17, %19 : vector<8x128xf32>
    %c0_10 = arith.constant 0 : index
    %c0_11 = arith.constant 0 : index
    %21 = vector.load %arg4[%c0_10, %c0_11] : memref<8x128xf32, #tpu.memory_space<vmem>>, vector<8x128xf32>
    tpu.vector_store %arg4[%c0_10, %c0_11], %20 {strides = array<i32>} : memref<8x128xf32, #tpu.memory_space<vmem>>, vector<8x128xf32>,
    %c0_i32_12 = arith.constant 0 : i32
    %22 = arith.cmpi eq, %arg0, %c0_i32_12 : i32
    %23 = arith.extui %22 : i1 to i32
    %c0_i32_13 = arith.constant 0 : i32
    %24 = arith.cmpi ne, %23, %c0_i32_13 : i32
    scf.if %24 {
      %c0_14 = arith.constant 0 : index
      %c0_15 = arith.constant 0 : index
      %25 = vector.load %arg4[%c0_14, %c0_15] : memref<8x128xf32, #tpu.memory_space<vmem>>, vector<8x128xf32>
      %26 = vector.shape_cast %25 : vector<8x128xf32> to vector<1x8x128xf32>
      %cst_16 = arith.constant dense<0.000000e+00> : vector<1xf32>
      %27 = vector.multi_reduction <add>, %26, %cst_16 [1, 2] : vector<1x8x128xf32> to vector<1xf32>
      %28 = vector.shape_cast %27 : vector<1xf32> to vector<1x1x1xf32>
      %29 = vector.extract %28[0, 0, 0] : f32 from vector<1x1x1xf32>
      %cst_17 = arith.constant 5.000000e-01 : f32
      %30 = arith.mulf %29, %cst_17 : f32
      %c0_18 = arith.constant 0 : index
      %c0_19 = arith.constant 0 : index
      %31 = memref.load %arg3[%c0_18, %c0_19] : memref<1x1xf32, #tpu.memory_space<smem>>
      memref.store %30, %arg3[%c0_18, %c0_19] : memref<1x1xf32, #tpu.memory_space<smem>>
    } else {
    }
    return
  }
  func.func @transform_0(%arg0: i32) -> (i32, i32) {
    %c0_i32 = arith.constant 0 : i32
    %c0_i32_0 = arith.constant 0 : i32
    return %arg0, %c0_i32 : i32, i32
  }
  func.func @transform_1(%arg0: i32) -> (i32, i32) {
    %c0_i32 = arith.constant 0 : i32
    %c0_i32_0 = arith.constant 0 : i32
    return %arg0, %c0_i32 : i32, i32
  }
  func.func @transform_2(%arg0: i32) -> (i32, i32) {
    %c0_i32 = arith.constant 0 : i32
    %c0_i32_0 = arith.constant 0 : i32
    %c0_i32_1 = arith.constant 0 : i32
    return %c0_i32, %c0_i32_0 : i32, i32
  }
}

</mosaic_0001>

<llo_original>
// kernel: tpu_custom_call.1
$region0: #{tpu_custom_call.1}
  #allocation0 [shape = 'u32[]', space=smem, size = 0x4, offset = 0x4, fixed_abs, tag = 'smem constant byte address 0x4 - core index']
  #allocation1 [shape = 'u32[144,128]{1,0:T(1,128)}', space=vmem, size = 0x12000, scoped, tag = 'internal scratch']
  #allocation2 [shape = 'f32[8,128]{1,0:T(8,128)}', space=vmem, size = 0x1000, scoped, tag = 'scratch operand']
  %s0 = inlined_call_operand.hbm [shape: f32[8,128], index: 0, kind: input, shape index: {}]
  %s1 = inlined_call_operand.hbm [shape: f32[8,128], index: 1, kind: input, shape index: {}]
  %s2 = inlined_call_operand.hbm [shape: f32[1,1], index: 2, kind: output, shape index: {}]
  %s3 = sld [smem:[#allocation0]]
  $region34: #{tpu_custom_call.1} parent=0
    _
  %s5 = ssub.s32 1, %s3
  %s6 = scalar_select 0, %s5, %s3
  $region1: #{tpu_custom_call.1} parent=0
    #allocation3 [shape = 'u8[4096]{0}', space=vmem, size = 0x1000, scoped, tag = 'input window, operand 0, single buffered']
    #allocation4 [shape = 's32[1]{0}', space=sflag, size = 0x4, scoped, tag = 'scoped memory for tpu_custom_call.1']
    #allocation5 [shape = 's32[1]{0}', space=sflag, size = 0x4, scoped, tag = 'scoped memory for tpu_custom_call.1']
    #allocation6 [shape = 'u8[4096]{0}', space=vmem, size = 0x1000, scoped, tag = 'input window, operand 1, single buffered']
    #allocation7 [shape = 's32[1]{0}', space=sflag, size = 0x4, scoped, tag = 'scoped memory for tpu_custom_call.1']
    #allocation8 [shape = 'u8[512]{0}', space=smem, size = 0x200, scoped, tag = 'output window, operand 0, single buffered']
    %7 = vsyncpa [#allocation4], 0
    %8 = vsyncpa [#allocation7], 0
    %9 = vsyncpa [#allocation5], 0
    // Predicated region
    $region2: #{tpu_custom_call.1} parent=1 // pred_check
      _
    $region3: #{tpu_custom_call.1} parent=1 // pred_check_branch
      %11 = sbr.rel (0) target = $region5
    $region4: #{tpu_custom_call.1} parent=1 // pred_region
      %s13 = ssub.s32 128, 128
      %14 = vsyncadd [#allocation4], %s13
      %s16 = sshll.u32 [#allocation3], 4
      %s17 = int_to_ptr.vmem [resolvable:$true] %s16
      %19 = dma.hbm_to_vmem [thread:$0]  %s0, 128, %s17, [#allocation4]
    $region5: #{tpu_custom_call.1} parent=1 // pred_fallthru
      _
    // Predicated region
    $region6: #{tpu_custom_call.1} parent=1 // pred_check
      _
    $region7: #{tpu_custom_call.1} parent=1 // pred_check_branch
      %21 = sbr.rel (0) target = $region9
    $region8: #{tpu_custom_call.1} parent=1 // pred_region
      %s23 = ssub.s32 128, 128
      %24 = vsyncadd [#allocation7], %s23
      %s26 = sshll.u32 [#allocation6], 4
      %s27 = int_to_ptr.vmem [resolvable:$true] %s26
      %29 = dma.hbm_to_vmem [thread:$0]  %s1, 128, %s27, [#allocation7]
    $region9: #{tpu_custom_call.1} parent=1 // pred_fallthru
      _
    // Predicated region
    $region10: #{tpu_custom_call.1} parent=1 // pred_check
      _
    $region11: #{tpu_custom_call.1} parent=1 // pred_check_branch
      %31 = sbr.rel (0) target = $region13
    $region12: #{tpu_custom_call.1} parent=1 // pred_region
      %32 = dma.done [#allocation4], 128
    $region13: #{tpu_custom_call.1} parent=1 // pred_fallthru
      _
    // Predicated region
    $region14: #{tpu_custom_call.1} parent=1 // pred_check
      _
    $region15: #{tpu_custom_call.1} parent=1 // pred_check_branch
      %34 = sbr.rel (0) target = $region17
    $region16: #{tpu_custom_call.1} parent=1 // pred_region
      %35 = dma.done [#allocation7], 128
    $region17: #{tpu_custom_call.1} parent=1 // pred_fallthru
      _
    %p36 = scmp.eq.s32.totalorder 0, 0
    // Predicated region
    $region18: #{tpu_custom_call.1} parent=1 // pred_check
      %p37 = pneg %p36
    $region19: #{tpu_custom_call.1} parent=1 // pred_check_branch
      %39 = sbr.rel (%p37) target = $region21
    $region20: #{tpu_custom_call.1} parent=1 // pred_region
      %40 = vst [vmem:[#allocation2] sm:$0xff] 0.0
    $region21: #{tpu_custom_call.1} parent=1 // pred_fallthru
      _
    %v41 = vld [vmem:[#allocation3] sm:$0xff]
    %v42 = vld [vmem:[#allocation6] sm:$0xff]
    %v43 = vsub.f32 %v41, %v42
    %v44 = vand.u32 2147483647, %v43
    %v45 = vmul.f32 %v44, 0.5
    %v46 = vadd.f32 %v45, 1.0
    %v47 = vlog2.pop %v46
    %v48 = vmul.f32 %v47, 0.6931472
    %v49 = vmul.f32 -0.5, %v45
    %v50 = vadd.f32 %v49, 1.0
    %v51 = vmul.f32 %v50, %v45
    %v52 = vand.u32 2147483647, %v45
    %vm53 = vcmp.lt.f32.partialorder %v52, 0.0004427343
    %v54 = vsel %vm53, %v51, %v48
    %v55 = vmul.f32 %v54, 10.0
    %v56 = vsub.f32 %v44, -7.917595
    %vm57 = vcmp.lt.f32.partialorder %v44, 10.0
    %v58 = vsel %vm57, %v55, %v56
    %v59 = vld [vmem:[#allocation2] sm:$0xff]
    %v60 = vadd.f32 %v58, 0.0
    %v61 = vadd.f32 %v59, %v60
    %62 = vst [vmem:[#allocation2] sm:$0xff] %v61
    // Predicated region
    $region22: #{tpu_custom_call.1} parent=1 // pred_check
      %p63 = pneg %p36
    $region23: #{tpu_custom_call.1} parent=1 // pred_check_branch
      %65 = sbr.rel (%p63) target = $region25
    $region24: #{tpu_custom_call.1} parent=1 // pred_region
      %v66 = vld [vmem:[#allocation2] sm:$0xff]
      %67 = vadd.xlane.f32.xlu0 %v66
      %v68 = vpop.xlane.xlu0 %67
      %v69 = vrot.slane %v68, 4
      %v70 = vadd.f32 %v68, %v69
      %v71 = vrot.slane %v70, 2
      %v72 = vadd.f32 %v70, %v71
      %v73 = vrot.slane %v72, 1
      %v74 = vadd.f32 %v72, %v73
      %s75 = vtos %v74
      %s76 = smul.f32 %s75, 0.5
      %s77 = scalar_lea.smem [#allocation8], 0
      %78 = sst [smem:[%s77]] %s76
    $region25: #{tpu_custom_call.1} parent=1 // pred_fallthru
      _
    // Predicated region
    $region26: #{tpu_custom_call.1} parent=1 // pred_check
      _
    $region27: #{tpu_custom_call.1} parent=1 // pred_check_branch
      %80 = sbr.rel (0) target = $region29
    $region28: #{tpu_custom_call.1} parent=1 // pred_region
      %s82 = ssub.s32 16, 16
      %83 = vsyncadd [#allocation5], %s82
      %86 = dma.smem_to_hbm [#allocation8], 16, %s2, [#allocation5]
    $region29: #{tpu_custom_call.1} parent=1 // pred_fallthru
      _
    // Predicated region
    $region30: #{tpu_custom_call.1} parent=1 // pred_check
      _
    $region31: #{tpu_custom_call.1} parent=1 // pred_check_branch
      %88 = sbr.rel (0) target = $region33
    $region32: #{tpu_custom_call.1} parent=1 // pred_region
      %89 = dma.done [#allocation5], 16
    $region33: #{tpu_custom_call.1} parent=1 // pred_fallthru
      _
    %90 = sfence
    %91 = vsyncpa [#allocation4], 1
    %92 = vsyncpa [#allocation7], 1
    %93 = vsyncpa [#allocation5], 1

</llo_original>
